<compile_context>
chip_gen: v6e
topology: v6e:2x2x1
jax: 0.10.0
libtpu: 0.0.40
codegen_flags: <defaults>
</compile_context>

<pallas_src>
import jax
import jax.numpy as jnp
from jax.experimental import pallas as pl
from jax.experimental.pallas import tpu as pltpu

LANE = 128
SUBLANE = 8


def _round_up(x, m):
    return ((x + m - 1) // m) * m


# ----------------------------- Pallas kernel --------------------------------

def _make_fused_mlp_kernel(num_layers):
    """Kernel over one row-tile: chained (matmul + bias [+ relu]) for all layers."""

    def kernel(*refs):
        # refs = (x_ref, w0, b0, w1, b1, ..., w_{L-1}, b_{L-1}, o_ref)
        x_ref, o_ref = refs[0], refs[-1]
        # Cast the streamed f32 row tile to bf16 under the first matmul (VPU).
        h = x_ref[...].astype(jnp.bfloat16)
        # NOTE: static Python loop is fine for shallow MLPs (<=4 layers); for deep
        # MLPs bound live ranges (lax.fori over a stacked-weight ref) to limit
        # vreg/VMEM pressure.
        for l in range(num_layers):
            w_ref = refs[1 + 2 * l]                      # bf16 [Din_p, Dout_p], VMEM-resident
            b_ref = refs[2 + 2 * l]                      # f32  [1, Dout_p]
            y = jnp.dot(h, w_ref[...], preferred_element_type=jnp.float32)
            y = y + b_ref[...]                           # bias (+ folded BN) in f32
            if l < num_layers - 1:
                h = jnp.maximum(y, 0.0).astype(jnp.bfloat16)   # ReLU, next MXU operand
            else:
                h = y                                    # final layer stays f32
        o_ref[...] = h.astype(o_ref.dtype)

    return kernel


# ----------------------------- parameter prep (once, off hot path) ----------

def prepare_params(params, bn_eps=1e-5):
    """Fold BN into the linears, pre-transpose to [Din, Dout], zero-pad feature dims
    to lane (128) multiples, and cast weights to bfloat16. Done once."""
    weights, biases, bns = params["weights"], params["biases"], params["bn"]
    num_layers = len(weights)

    folded = []
    for i in range(num_layers):
        w_t = weights[i].astype(jnp.float32).T            # [Din, Dout]
        b = biases[i].astype(jnp.float32)                 # [Dout]
        if i < num_layers - 1:
            bn = bns[i]
            scale = bn["gamma"] / jnp.sqrt(bn["var"] + bn_eps)
            shift = bn["beta"] - bn["mean"] * scale
            w_t = w_t * scale[None, :]
            b = b * scale + shift
        folded.append((w_t, b))

    padded_w, padded_b = [], []
    extra_in = 0                                          # zero rows from previous layer's pad
    for w_t, b in folded:
        d_in, d_out = w_t.shape
        d_out_p = _round_up(d_out, LANE)
        w_p = jnp.pad(w_t, ((0, extra_in), (0, d_out_p - d_out))).astype(jnp.bfloat16)
        b_p = jnp.pad(b, (0, d_out_p - d_out)).reshape(1, d_out_p).astype(jnp.float32)
        padded_w.append(w_p)
        padded_b.append(b_p)
        extra_in = d_out_p - d_out

    # TODO(synk): optional int8 weight quantization (per-output-channel scale folded
    # into the f32 epilogue) for v5e/v6e — not applied here (v7x MXU has no int path).
    return {"w": padded_w, "b": padded_b, "out_dim": int(folded[-1][0].shape[1])}


# ----------------------------- forward wrapper ------------------------------

def _physical_vmem_bytes():
    try:
        return int(pltpu.get_tpu_info().vmem_capacity_bytes)
    except Exception:
        return 64 * 1024 * 1024      # conservative fallback (v7x per-TC VMEM)


def mlp_forward(x, prepared, block_rows=512, weight_buffer_count=1,
                out_dtype=jnp.float32):
    """x: [N, Din] float32 -> [N, output_dim] (single fused pallas_call)."""
    padded_w, padded_b = prepared["w"], prepared["b"]
    out_dim = prepared["out_dim"]
    num_layers = len(padded_w)

    n, d_in = x.shape
    assert d_in == padded_w[0].shape[0], "input feature dim mismatch"
    d_out_p = padded_w[-1].shape[1]
    out_itemsize = jnp.dtype(out_dtype).itemsize

    # Row tiling: TM multiple of the sublane (8), default 512 (fills the 2x256 MXU),
    # clamped so the grid has >=2 steps when there is enough work (v7x megacore).
    tm = max(SUBLANE, min(block_rows, _round_up(n, SUBLANE)))
    if n > 256:
        tm = min(tm, _round_up(pl.cdiv(n, 2), 256))

    # VMEM budget: resident weights/biases (1x when single-buffered) + streamed
    # row tiles (double-buffered x/out) + f32 intermediates. Derive the cap from
    # the actual chip with ~15% headroom; shrink TM if the budget is tight.
    weight_bytes = sum(int(a.size) * a.dtype.itemsize for a in padded_w + padded_b)
    wb_mult = 1 if weight_buffer_count == 1 else 2
    max_feat = max(w.shape[1] for w in padded_w)
    vmem_limit = int(0.85 * _physical_vmem_bytes())

    def _act_bytes(tm_):
        return 2 * tm_ * (d_in * 4 + d_out_p * out_itemsize) + 4 * tm_ * max_feat * 4

    while tm > SUBLANE and wb_mult * weight_bytes + _act_bytes(tm) > vmem_limit:
        tm = max(SUBLANE, tm // 2)
    # TODO(synk): streamed-weight fallback (extra "arbitrary" grid axis over K/Dout
    # with pl.when accumulator init) when resident weights alone exceed the VMEM cap
    # (matters on v7x's 64 MiB for large hidden dims); all-resident is kept here.

    grid = (pl.cdiv(n, tm),)

    w_mode = pl.Buffered(weight_buffer_count) if weight_buffer_count else None
    in_specs = [pl.BlockSpec((tm, d_in), lambda i: (i, 0))]
    args = [x]
    for w, b in zip(padded_w, padded_b):
        if w_mode is None:
            in_specs.append(pl.BlockSpec(w.shape, lambda i: (0, 0)))
            in_specs.append(pl.BlockSpec(b.shape, lambda i: (0, 0)))
        else:
            # Constant-index blocks are DMA'd once; single-buffer them so resident
            # weights cost 1x their bytes in VMEM.
            in_specs.append(pl.BlockSpec(w.shape, lambda i: (0, 0), pipeline_mode=w_mode))
            in_specs.append(pl.BlockSpec(b.shape, lambda i: (0, 0), pipeline_mode=w_mode))
        args.append(w)
        args.append(b)

    flops = 2 * n * sum(int(w.shape[0]) * int(w.shape[1]) for w in padded_w)
    bytes_accessed = (n * d_in * 4 + weight_bytes + n * d_out_p * out_itemsize)
    cost = pl.CostEstimate(flops=flops, transcendentals=0,
                           bytes_accessed=bytes_accessed)

    out_padded = pl.pallas_call(
        _make_fused_mlp_kernel(num_layers),
        out_shape=jax.ShapeDtypeStruct((n, d_out_p), out_dtype),
        grid_spec=pltpu.PrefetchScalarGridSpec(
            num_scalar_prefetch=0,
            grid=grid,
            in_specs=in_specs,
            out_specs=pl.BlockSpec((tm, d_out_p), lambda i: (i, 0)),
        ),
        compiler_params=pltpu.CompilerParams(
            dimension_semantics=("parallel",),
            vmem_limit_bytes=vmem_limit,
        ),
        cost_estimate=cost,
    )(*args)

    return out_padded[:, :out_dim]


# ----------------------------- pure-JAX references --------------------------

def mlp_reference(x, params, bn_eps=1e-5):
    """Exact eval-mode PyTorch semantics in float32 (HIGHEST matmul precision)."""
    weights, biases, bns = params["weights"], params["biases"], params["bn"]
    h = x.astype(jnp.float32)
    for i in range(len(weights) - 1):
        y = jnp.dot(h, weights[i].T, precision=jax.lax.Precision.HIGHEST) + biases[i]
        bn = bns[i]
        y = (y - bn["mean"]) / jnp.sqrt(bn["var"] + bn_eps) * bn["gamma"] + bn["beta"]
        h = jnp.maximum(y, 0.0)
    return jnp.dot(h, weights[-1].T, precision=jax.lax.Precision.HIGHEST) + biases[-1]


def mlp_reference_matched(x, prepared):
    """Same folded/padded/bf16-operand algorithm as the kernel, in plain JAX."""
    num_layers = len(prepared["w"])
    h = x.astype(jnp.float32)
    for i, (w, b) in enumerate(zip(prepared["w"], prepared["b"])):
        y = jnp.dot(h.astype(jnp.bfloat16), w, preferred_element_type=jnp.float32) + b
        h = jnp.maximum(y, 0.0) if i < num_layers - 1 else y
    return h[:, : prepared["out_dim"]]


# ----------------------------- parameter init -------------------------------

def _orthogonal(key, d_out, d_in):
    """torch.nn.init.orthogonal_-style init, returning shape [d_out, d_in]."""
    rows, cols = d_out, d_in
    a = jax.random.normal(key, (max(rows, cols), min(rows, cols)), jnp.float32)
    q, r = jnp.linalg.qr(a)                 # q: [max, min]
    q = q * jnp.sign(jnp.diagonal(r))[None, :]
    if rows < cols:
        q = q.T
    return q[:rows, :cols]


def init_params(key, num_layers, input_dim, hidden_dim, output_dim, orthogonal=True):
    dims = ([(input_dim, output_dim)] if num_layers == 1 else
            [(input_dim, hidden_dim)]
            + [(hidden_dim, hidden_dim)] * (num_layers - 2)
            + [(hidden_dim, output_dim)])
    weights, biases, bn = [], [], []
    for (d_in, d_out) in dims:
        key, kw, kb = jax.random.split(key, 3)
        if orthogonal:
            w = _orthogonal(kw, d_out, d_in)
        else:
            w = jax.random.normal(kw, (d_out, d_in), jnp.float32) / jnp.sqrt(d_in)
        b = jax.random.uniform(kb, (d_out,), jnp.float32, -0.1, 0.1)
        weights.append(w)
        biases.append(b)
    for _ in range(max(num_layers - 1, 0)):
        key, k1, k2, k3, k4 = jax.random.split(key, 5)
        bn.append(dict(
            gamma=1.0 + 0.1 * jax.random.normal(k1, (hidden_dim,), jnp.float32),
            beta=0.1 * jax.random.normal(k2, (hidden_dim,), jnp.float32),
            mean=0.1 * jax.random.normal(k3, (hidden_dim,), jnp.float32),
            var=1.0 + 0.1 * jax.random.uniform(k4, (hidden_dim,), jnp.float32),
        ))
    return {"weights": weights, "biases": biases, "bn": bn}


# TODO(synk): normalize_layers() (spectral-norm Lipschitz clipping) is a training-time
# weight rescale executed only when module.training is True; omitted from the
# inference kernel (apply it to `params` before prepare_params() if needed).

if __name__ == "__main__":
    key = jax.random.PRNGKey(0)
    num_layers, input_dim, hidden_dim, output_dim = 3, 16, 32, 8
    n_nodes = 8

    kx, kp = jax.random.split(key)
    x = jax.random.normal(kx, (n_nodes, input_dim), jnp.float32)
    params = init_params(kp, num_layers, input_dim, hidden_dim, output_dim, orthogonal=True)
    prepared = prepare_params(params)

    def _run(buffer_count):
        fwd = jax.jit(lambda xx: mlp_forward(xx, prepared,
                                             weight_buffer_count=buffer_count))
        return jax.block_until_ready(fwd(x))

    try:
        out = _run(1)        # single-buffered resident weights (1x VMEM)
    except Exception:
        out = _run(None)     # defensive fallback: default double-buffering

    assert out.shape == (n_nodes, output_dim)

    # 1) Strict check: same folded/padded/bf16-operand computation in plain JAX.
    ref_matched = mlp_reference_matched(x, prepared)
    err_matched = float(jnp.max(jnp.abs(out - ref_matched)))
    assert err_matched < 1e-4, f"matched-precision max abs err {err_matched}"

    # 2) Semantic check vs exact f32 PyTorch eval-mode math; tolerance covers
    #    bf16 MXU-operand rounding (accumulation stays f32).
    ref_f32 = mlp_reference(x, params)
    err_f32 = float(jnp.max(jnp.abs(out - ref_f32)))
    assert err_f32 < 5e-2, f"f32-reference max abs err {err_f32}"

    print("KERNEL_OK")
</pallas_src>

<mosaic_0001>
module attributes {stable_mosaic.version = 11 : i64} {
  func.func @kernel(%arg0: i32, %arg1: memref<8x16xf32, #tpu.memory_space<vmem>>, %arg2: memref<16x128xbf16, #tpu.memory_space<vmem>>, %arg3: memref<1x128xf32, #tpu.memory_space<vmem>>, %arg4: memref<128x128xbf16, #tpu.memory_space<vmem>>, %arg5: memref<1x128xf32, #tpu.memory_space<vmem>>, %arg6: memref<128x128xbf16, #tpu.memory_space<vmem>>, %arg7: memref<1x128xf32, #tpu.memory_space<vmem>>, %arg8: memref<8x128xf32, #tpu.memory_space<vmem>>) attributes {dimension_semantics = [#tpu.dimension_semantics<parallel>], iteration_bounds = array<i64: 1>, scalar_prefetch = 0 : i64, scratch_operands = 0 : i64, tpu.core_type = #tpu.core_type<tc>, window_params = [{transform_indices = @transform_0, window_bounds = array<i64: 8, 16>}, {pipeline_mode = #tpu.pipeline_mode<synchronous>, transform_indices = @transform_1, window_bounds = array<i64: 16, 128>}, {pipeline_mode = #tpu.pipeline_mode<synchronous>, transform_indices = @transform_2, window_bounds = array<i64: 1, 128>}, {pipeline_mode = #tpu.pipeline_mode<synchronous>, transform_indices = @transform_3, window_bounds = array<i64: 128, 128>}, {pipeline_mode = #tpu.pipeline_mode<synchronous>, transform_indices = @transform_4, window_bounds = array<i64: 1, 128>}, {pipeline_mode = #tpu.pipeline_mode<synchronous>, transform_indices = @transform_5, window_bounds = array<i64: 128, 128>}, {pipeline_mode = #tpu.pipeline_mode<synchronous>, transform_indices = @transform_6, window_bounds = array<i64: 1, 128>}, {transform_indices = @transform_7, window_bounds = array<i64: 8, 128>}]} {
    %c0 = arith.constant 0 : index
    %c0_0 = arith.constant 0 : index
    %0 = vector.load %arg1[%c0, %c0_0] : memref<8x16xf32, #tpu.memory_space<vmem>>, vector<8x16xf32>
    %1 = arith.truncf %0 : vector<8x16xf32> to vector<8x16xbf16>
    %c0_1 = arith.constant 0 : index
    %c0_2 = arith.constant 0 : index
    %2 = vector.load %arg2[%c0_1, %c0_2] : memref<16x128xbf16, #tpu.memory_space<vmem>>, vector<16x128xbf16>
    %cst = arith.constant dense<0.000000e+00> : vector<8x128xf32>
    %3 = tpu.matmul %1, %2, %cst {dimension_numbers = #tpu.dot_dimension_numbers<[1], [0], [0], [1], [0, 0, 1, 1], [], []>} : vector<8x16xbf16>, vector<16x128xbf16>, vector<8x128xf32> -> vector<8x128xf32>
    %c0_3 = arith.constant 0 : index
    %c0_4 = arith.constant 0 : index
    %4 = vector.load %arg3[%c0_3, %c0_4] : memref<1x128xf32, #tpu.memory_space<vmem>>, vector<1x128xf32>
    %5 = vector.broadcast %4 : vector<1x128xf32> to vector<8x128xf32>
    %6 = arith.addf %3, %5 : vector<8x128xf32>
    %cst_5 = arith.constant 0.000000e+00 : f32
    %7 = vector.broadcast %cst_5 : f32 to vector<8x128xf32>
    %8 = arith.maximumf %6, %7 : vector<8x128xf32>
    %9 = arith.truncf %8 : vector<8x128xf32> to vector<8x128xbf16>
    %c0_6 = arith.constant 0 : index
    %c0_7 = arith.constant 0 : index
    %10 = vector.load %arg4[%c0_6, %c0_7] : memref<128x128xbf16, #tpu.memory_space<vmem>>, vector<128x128xbf16>
    %cst_8 = arith.constant dense<0.000000e+00> : vector<8x128xf32>
    %11 = tpu.matmul %9, %10, %cst_8 {dimension_numbers = #tpu.dot_dimension_numbers<[1], [0], [0], [1], [0, 0, 1, 1], [], []>} : vector<8x128xbf16>, vector<128x128xbf16>, vector<8x128xf32> -> vector<8x128xf32>
    %c0_9 = arith.constant 0 : index
    %c0_10 = arith.constant 0 : index
    %12 = vector.load %arg5[%c0_9, %c0_10] : memref<1x128xf32, #tpu.memory_space<vmem>>, vector<1x128xf32>
    %13 = vector.broadcast %12 : vector<1x128xf32> to vector<8x128xf32>
    %14 = arith.addf %11, %13 : vector<8x128xf32>
    %cst_11 = arith.constant 0.000000e+00 : f32
    %15 = vector.broadcast %cst_11 : f32 to vector<8x128xf32>
    %16 = arith.maximumf %14, %15 : vector<8x128xf32>
    %17 = arith.truncf %16 : vector<8x128xf32> to vector<8x128xbf16>
    %c0_12 = arith.constant 0 : index
    %c0_13 = arith.constant 0 : index
    %18 = vector.load %arg6[%c0_12, %c0_13] : memref<128x128xbf16, #tpu.memory_space<vmem>>, vector<128x128xbf16>
    %cst_14 = arith.constant dense<0.000000e+00> : vector<8x128xf32>
    %19 = tpu.matmul %17, %18, %cst_14 {dimension_numbers = #tpu.dot_dimension_numbers<[1], [0], [0], [1], [0, 0, 1, 1], [], []>} : vector<8x128xbf16>, vector<128x128xbf16>, vector<8x128xf32> -> vector<8x128xf32>
    %c0_15 = arith.constant 0 : index
    %c0_16 = arith.constant 0 : index
    %20 = vector.load %arg7[%c0_15, %c0_16] : memref<1x128xf32, #tpu.memory_space<vmem>>, vector<1x128xf32>
    %21 = vector.broadcast %20 : vector<1x128xf32> to vector<8x128xf32>
    %22 = arith.addf %19, %21 : vector<8x128xf32>
    %c0_17 = arith.constant 0 : index
    %c0_18 = arith.constant 0 : index
    %23 = vector.load %arg8[%c0_17, %c0_18] : memref<8x128xf32, #tpu.memory_space<vmem>>, vector<8x128xf32>
    tpu.vector_store %arg8[%c0_17, %c0_18], %22 {strides = array<i32>} : memref<8x128xf32, #tpu.memory_space<vmem>>, vector<8x128xf32>,
    return
  }
  func.func @transform_0(%arg0: i32) -> (i32, i32) {
    %c0_i32 = arith.constant 0 : i32
    %c0_i32_0 = arith.constant 0 : i32
    return %arg0, %c0_i32 : i32, i32
  }
  func.func @transform_1(%arg0: i32) -> (i32, i32) {
    %c0_i32 = arith.constant 0 : i32
    %c0_i32_0 = arith.constant 0 : i32
    %c0_i32_1 = arith.constant 0 : i32
    return %c0_i32, %c0_i32_0 : i32, i32
  }
  func.func @transform_2(%arg0: i32) -> (i32, i32) {
    %c0_i32 = arith.constant 0 : i32
    %c0_i32_0 = arith.constant 0 : i32
    %c0_i32_1 = arith.constant 0 : i32
    return %c0_i32, %c0_i32_0 : i32, i32
  }
  func.func @transform_3(%arg0: i32) -> (i32, i32) {
    %c0_i32 = arith.constant 0 : i32
    %c0_i32_0 = arith.constant 0 : i32
    %c0_i32_1 = arith.constant 0 : i32
    return %c0_i32, %c0_i32_0 : i32, i32
  }
  func.func @transform_4(%arg0: i32) -> (i32, i32) {
    %c0_i32 = arith.constant 0 : i32
    %c0_i32_0 = arith.constant 0 : i32
    %c0_i32_1 = arith.constant 0 : i32
    return %c0_i32, %c0_i32_0 : i32, i32
  }
  func.func @transform_5(%arg0: i32) -> (i32, i32) {
    %c0_i32 = arith.constant 0 : i32
    %c0_i32_0 = arith.constant 0 : i32
    %c0_i32_1 = arith.constant 0 : i32
    return %c0_i32, %c0_i32_0 : i32, i32
  }
  func.func @transform_6(%arg0: i32) -> (i32, i32) {
    %c0_i32 = arith.constant 0 : i32
    %c0_i32_0 = arith.constant 0 : i32
    %c0_i32_1 = arith.constant 0 : i32
    return %c0_i32, %c0_i32_0 : i32, i32
  }
  func.func @transform_7(%arg0: i32) -> (i32, i32) {
    %c0_i32 = arith.constant 0 : i32
    %c0_i32_0 = arith.constant 0 : i32
    return %arg0, %c0_i32 : i32, i32
  }
}

module attributes {stable_mosaic.version = 11 : i64} {
  func.func @kernel(%arg0: i32, %arg1: memref<8x16xf32, #tpu.memory_space<vmem>>, %arg2: memref<16x128xbf16, #tpu.memory_space<vmem>>, %arg3: memref<1x128xf32, #tpu.memory_space<vmem>>, %arg4: memref<128x128xbf16, #tpu.memory_space<vmem>>, %arg5: memref<1x128xf32, #tpu.memory_space<vmem>>, %arg6: memref<128x128xbf16, #tpu.memory_space<vmem>>, %arg7: memref<1x128xf32, #tpu.memory_space<vmem>>, %arg8: memref<8x128xf32, #tpu.memory_space<vmem>>) attributes {dimension_semantics = [#tpu.dimension_semantics<parallel>], iteration_bounds = array<i64: 1>, scalar_prefetch = 0 : i64, scratch_operands = 0 : i64, tpu.core_type = #tpu.core_type<tc>, window_params = [{transform_indices = @transform_0, window_bounds = array<i64: 8, 16>}, {pipeline_mode = #tpu.pipeline_mode<synchronous>, transform_indices = @transform_1, window_bounds = array<i64: 16, 128>}, {pipeline_mode = #tpu.pipeline_mode<synchronous>, transform_indices = @transform_2, window_bounds = array<i64: 1, 128>}, {pipeline_mode = #tpu.pipeline_mode<synchronous>, transform_indices = @transform_3, window_bounds = array<i64: 128, 128>}, {pipeline_mode = #tpu.pipeline_mode<synchronous>, transform_indices = @transform_4, window_bounds = array<i64: 1, 128>}, {pipeline_mode = #tpu.pipeline_mode<synchronous>, transform_indices = @transform_5, window_bounds = array<i64: 128, 128>}, {pipeline_mode = #tpu.pipeline_mode<synchronous>, transform_indices = @transform_6, window_bounds = array<i64: 1, 128>}, {transform_indices = @transform_7, window_bounds = array<i64: 8, 128>}]} {
    %c0 = arith.constant 0 : index
    %c0_0 = arith.constant 0 : index
    %0 = vector.load %arg1[%c0, %c0_0] : memref<8x16xf32, #tpu.memory_space<vmem>>, vector<8x16xf32>
    %1 = arith.truncf %0 : vector<8x16xf32> to vector<8x16xbf16>
    %c0_1 = arith.constant 0 : index
    %c0_2 = arith.constant 0 : index
    %2 = vector.load %arg2[%c0_1, %c0_2] : memref<16x128xbf16, #tpu.memory_space<vmem>>, vector<16x128xbf16>
    %cst = arith.constant dense<0.000000e+00> : vector<8x128xf32>
    %3 = tpu.matmul %1, %2, %cst {dimension_numbers = #tpu.dot_dimension_numbers<[1], [0], [0], [1], [0, 0, 1, 1], [], []>} : vector<8x16xbf16>, vector<16x128xbf16>, vector<8x128xf32> -> vector<8x128xf32>
    %c0_3 = arith.constant 0 : index
    %c0_4 = arith.constant 0 : index
    %4 = vector.load %arg3[%c0_3, %c0_4] : memref<1x128xf32, #tpu.memory_space<vmem>>, vector<1x128xf32>
    %5 = vector.broadcast %4 : vector<1x128xf32> to vector<8x128xf32>
    %6 = arith.addf %3, %5 : vector<8x128xf32>
    %cst_5 = arith.constant 0.000000e+00 : f32
    %7 = vector.broadcast %cst_5 : f32 to vector<8x128xf32>
    %8 = arith.maximumf %6, %7 : vector<8x128xf32>
    %9 = arith.truncf %8 : vector<8x128xf32> to vector<8x128xbf16>
    %c0_6 = arith.constant 0 : index
    %c0_7 = arith.constant 0 : index
    %10 = vector.load %arg4[%c0_6, %c0_7] : memref<128x128xbf16, #tpu.memory_space<vmem>>, vector<128x128xbf16>
    %cst_8 = arith.constant dense<0.000000e+00> : vector<8x128xf32>
    %11 = tpu.matmul %9, %10, %cst_8 {dimension_numbers = #tpu.dot_dimension_numbers<[1], [0], [0], [1], [0, 0, 1, 1], [], []>} : vector<8x128xbf16>, vector<128x128xbf16>, vector<8x128xf32> -> vector<8x128xf32>
    %c0_9 = arith.constant 0 : index
    %c0_10 = arith.constant 0 : index
    %12 = vector.load %arg5[%c0_9, %c0_10] : memref<1x128xf32, #tpu.memory_space<vmem>>, vector<1x128xf32>
    %13 = vector.broadcast %12 : vector<1x128xf32> to vector<8x128xf32>
    %14 = arith.addf %11, %13 : vector<8x128xf32>
    %cst_11 = arith.constant 0.000000e+00 : f32
    %15 = vector.broadcast %cst_11 : f32 to vector<8x128xf32>
    %16 = arith.maximumf %14, %15 : vector<8x128xf32>
    %17 = arith.truncf %16 : vector<8x128xf32> to vector<8x128xbf16>
    %c0_12 = arith.constant 0 : index
    %c0_13 = arith.constant 0 : index
    %18 = vector.load %arg6[%c0_12, %c0_13] : memref<128x128xbf16, #tpu.memory_space<vmem>>, vector<128x128xbf16>
    %cst_14 = arith.constant dense<0.000000e+00> : vector<8x128xf32>
    %19 = tpu.matmul %17, %18, %cst_14 {dimension_numbers = #tpu.dot_dimension_numbers<[1], [0], [0], [1], [0, 0, 1, 1], [], []>} : vector<8x128xbf16>, vector<128x128xbf16>, vector<8x128xf32> -> vector<8x128xf32>
    %c0_15 = arith.constant 0 : index
    %c0_16 = arith.constant 0 : index
    %20 = vector.load %arg7[%c0_15, %c0_16] : memref<1x128xf32, #tpu.memory_space<vmem>>, vector<1x128xf32>
    %21 = vector.broadcast %20 : vector<1x128xf32> to vector<8x128xf32>
    %22 = arith.addf %19, %21 : vector<8x128xf32>
    %c0_17 = arith.constant 0 : index
    %c0_18 = arith.constant 0 : index
    %23 = vector.load %arg8[%c0_17, %c0_18] : memref<8x128xf32, #tpu.memory_space<vmem>>, vector<8x128xf32>
    tpu.vector_store %arg8[%c0_17, %c0_18], %22 {strides = array<i32>} : memref<8x128xf32, #tpu.memory_space<vmem>>, vector<8x128xf32>,
    return
  }
  func.func @transform_0(%arg0: i32) -> (i32, i32) {
    %c0_i32 = arith.constant 0 : i32
    %c0_i32_0 = arith.constant 0 : i32
    return %arg0, %c0_i32 : i32, i32
  }
  func.func @transform_1(%arg0: i32) -> (i32, i32) {
    %c0_i32 = arith.constant 0 : i32
    %c0_i32_0 = arith.constant 0 : i32
    %c0_i32_1 = arith.constant 0 : i32
    return %c0_i32, %c0_i32_0 : i32, i32
  }
  func.func @transform_2(%arg0: i32) -> (i32, i32) {
    %c0_i32 = arith.constant 0 : i32
    %c0_i32_0 = arith.constant 0 : i32
    %c0_i32_1 = arith.constant 0 : i32
    return %c0_i32, %c0_i32_0 : i32, i32
  }
  func.func @transform_3(%arg0: i32) -> (i32, i32) {
    %c0_i32 = arith.constant 0 : i32
    %c0_i32_0 = arith.constant 0 : i32
    %c0_i32_1 = arith.constant 0 : i32
    return %c0_i32, %c0_i32_0 : i32, i32
  }
  func.func @transform_4(%arg0: i32) -> (i32, i32) {
    %c0_i32 = arith.constant 0 : i32
    %c0_i32_0 = arith.constant 0 : i32
    %c0_i32_1 = arith.constant 0 : i32
    return %c0_i32, %c0_i32_0 : i32, i32
  }
  func.func @transform_5(%arg0: i32) -> (i32, i32) {
    %c0_i32 = arith.constant 0 : i32
    %c0_i32_0 = arith.constant 0 : i32
    %c0_i32_1 = arith.constant 0 : i32
    return %c0_i32, %c0_i32_0 : i32, i32
  }
  func.func @transform_6(%arg0: i32) -> (i32, i32) {
    %c0_i32 = arith.constant 0 : i32
    %c0_i32_0 = arith.constant 0 : i32
    %c0_i32_1 = arith.constant 0 : i32
    return %c0_i32, %c0_i32_0 : i32, i32
  }
  func.func @transform_7(%arg0: i32) -> (i32, i32) {
    %c0_i32 = arith.constant 0 : i32
    %c0_i32_0 = arith.constant 0 : i32
    return %arg0, %c0_i32 : i32, i32
  }
}

</mosaic_0001>

<llo_original>
// kernel: _lambda_.1
$region0: #{_lambda_.1}
  #allocation0 [shape = 'u32[]', space=smem, size = 0x4, offset = 0x4, fixed_abs, tag = 'smem constant byte address 0x4 - core index']
  #allocation1 [shape = 'u32[144,128]{1,0:T(1,128)}', space=vmem, size = 0x12000, scoped, tag = 'internal scratch']
  %s0 = inlined_call_operand.hbm [shape: f32[8,16], index: 0, kind: input, shape index: {}]
  %s1 = inlined_call_operand.hbm [shape: bf16[16,128], index: 1, kind: input, shape index: {}]
  %s2 = inlined_call_operand.vmem [shape: f32[1,128], index: 2, kind: input, shape index: {}]
  %s3 = inlined_call_operand.hbm [shape: bf16[128,128], index: 3, kind: input, shape index: {}]
  %s4 = inlined_call_operand.vmem [shape: f32[1,128], index: 4, kind: input, shape index: {}]
  %s5 = inlined_call_operand.hbm [shape: bf16[128,128], index: 5, kind: input, shape index: {}]
  %s6 = inlined_call_operand.vmem [shape: f32[1,128], index: 6, kind: input, shape index: {}]
  %s7 = inlined_call_operand.hbm [shape: f32[8,128], index: 7, kind: output, shape index: {}]
  %s8 = sld [smem:[#allocation0]]
  $region54: #{_lambda_.1} parent=0
    _
  %s10 = ssub.s32 1, %s8
  %s11 = scalar_select 0, %s10, %s8
  $region1: #{_lambda_.1} parent=0
    #allocation2 [shape = 'u8[4096]{0}', space=vmem, size = 0x1000, scoped, tag = 'input window, operand 0, single buffered']
    #allocation3 [shape = 's32[1]{0}', space=sflag, size = 0x4, scoped, tag = 'scoped memory for _lambda_.1']
    #allocation4 [shape = 's32[1]{0}', space=sflag, size = 0x4, scoped, tag = 'scoped memory for _lambda_.1']
    #allocation5 [shape = 'u8[4096]{0}', space=vmem, size = 0x1000, scoped, tag = 'input window, operand 1, single buffered']
    #allocation6 [shape = 's32[1]{0}', space=sflag, size = 0x4, scoped, tag = 'scoped memory for _lambda_.1']
    #allocation7 [shape = 'u8[32768]{0}', space=vmem, size = 0x8000, scoped, tag = 'input window, operand 3, single buffered']
    #allocation8 [shape = 'u8[32768]{0}', space=vmem, size = 0x8000, scoped, tag = 'input window, operand 5, single buffered']
    #allocation9 [shape = 's32[1]{0}', space=sflag, size = 0x4, scoped, tag = 'scoped memory for _lambda_.1']
    #allocation10 [shape = 'u8[4096]{0}', space=vmem, size = 0x1000, scoped, tag = 'output window, operand 0, single buffered']
    %12 = vsyncpa [#allocation3], 0
    %13 = vsyncpa [#allocation6], 0
    %14 = vsyncpa [#allocation9], 0
    %15 = vsyncpa [#allocation4], 0
    // Predicated region
    $region2: #{_lambda_.1} parent=1 // pred_check
      _
    $region3: #{_lambda_.1} parent=1 // pred_check_branch
      %17 = sbr.rel (0) target = $region5
    $region4: #{_lambda_.1} parent=1 // pred_region
      %s19 = ssub.s32 128, 128
      %20 = vsyncadd [#allocation3], %s19
      %s22 = sshll.u32 [#allocation2], 4
      %s23 = int_to_ptr.vmem [resolvable:$true] %s22
      %25 = dma.hbm_to_vmem [thread:$0]  %s0, 128, %s23, [#allocation3]
    $region5: #{_lambda_.1} parent=1 // pred_fallthru
      _
    // Predicated region
    $region6: #{_lambda_.1} parent=1 // pred_check
      _
    $region7: #{_lambda_.1} parent=1 // pred_check_branch
      %27 = sbr.rel (0) target = $region9
    $region8: #{_lambda_.1} parent=1 // pred_region
      %s29 = ssub.s32 128, 128
      %30 = vsyncadd [#allocation6], %s29
      %s31 = sshll.u32 [#allocation5], 4
      %s32 = int_to_ptr.vmem [resolvable:$true] %s31
      %37 = dma.hbm_to_vmem [thread:$0]  %s1, 128, %s32, [#allocation6], 64, 64, 4
    $region9: #{_lambda_.1} parent=1 // pred_fallthru
      _
    // Predicated region
    $region10: #{_lambda_.1} parent=1 // pred_check
      _
    $region11: #{_lambda_.1} parent=1 // pred_check_branch
      %39 = sbr.rel (0) target = $region13
    $region12: #{_lambda_.1} parent=1 // pred_region
      _
    $region13: #{_lambda_.1} parent=1 // pred_fallthru
      _
    // Predicated region
    $region14: #{_lambda_.1} parent=1 // pred_check
      _
    $region15: #{_lambda_.1} parent=1 // pred_check_branch
      %41 = sbr.rel (0) target = $region17
    $region16: #{_lambda_.1} parent=1 // pred_region
      %s43 = ssub.s32 1024, 1024
      %44 = vsyncadd [#allocation6], %s43
      %s45 = sshll.u32 [#allocation7], 4
      %s46 = int_to_ptr.vmem [resolvable:$true] %s45
      %51 = dma.hbm_to_vmem [thread:$0]  %s3, 1024, %s46, [#allocation6], 64, 64, 4
    $region17: #{_lambda_.1} parent=1 // pred_fallthru
      _
    // Predicated region
    $region18: #{_lambda_.1} parent=1 // pred_check
      _
    $region19: #{_lambda_.1} parent=1 // pred_check_branch
      %53 = sbr.rel (0) target = $region21
    $region20: #{_lambda_.1} parent=1 // pred_region
      _
    $region21: #{_lambda_.1} parent=1 // pred_fallthru
      _
    // Predicated region
    $region22: #{_lambda_.1} parent=1 // pred_check
      _
    $region23: #{_lambda_.1} parent=1 // pred_check_branch
      %55 = sbr.rel (0) target = $region25
    $region24: #{_lambda_.1} parent=1 // pred_region
      %s57 = ssub.s32 1024, 1024
      %58 = vsyncadd [#allocation9], %s57
      %s59 = sshll.u32 [#allocation8], 4
      %s60 = int_to_ptr.vmem [resolvable:$true] %s59
      %65 = dma.hbm_to_vmem [thread:$0]  %s5, 1024, %s60, [#allocation9], 64, 64, 4
    $region25: #{_lambda_.1} parent=1 // pred_fallthru
      _
    // Predicated region
    $region26: #{_lambda_.1} parent=1 // pred_check
      _
    $region27: #{_lambda_.1} parent=1 // pred_check_branch
      %67 = sbr.rel (0) target = $region29
    $region28: #{_lambda_.1} parent=1 // pred_region
      _
    $region29: #{_lambda_.1} parent=1 // pred_fallthru
      _
    // Predicated region
    $region30: #{_lambda_.1} parent=1 // pred_check
      _
    $region31: #{_lambda_.1} parent=1 // pred_check_branch
      %69 = sbr.rel (0) target = $region33
    $region32: #{_lambda_.1} parent=1 // pred_region
      %70 = dma.done [#allocation3], 128
    $region33: #{_lambda_.1} parent=1 // pred_fallthru
      _
    // Predicated region
    $region34: #{_lambda_.1} parent=1 // pred_check
      _
    $region35: #{_lambda_.1} parent=1 // pred_check_branch
      %72 = sbr.rel (0) target = $region37
    $region36: #{_lambda_.1} parent=1 // pred_region
      %73 = dma.done [#allocation6], 128
    $region37: #{_lambda_.1} parent=1 // pred_fallthru
      _
    // Predicated region
    $region38: #{_lambda_.1} parent=1 // pred_check
      _
    $region39: #{_lambda_.1} parent=1 // pred_check_branch
      %75 = sbr.rel (0) target = $region41
    $region40: #{_lambda_.1} parent=1 // pred_region
      %76 = dma.done [#allocation6], 1024
    $region41: #{_lambda_.1} parent=1 // pred_fallthru
      _
    // Predicated region
    $region42: #{_lambda_.1} parent=1 // pred_check
      _
    $region43: #{_lambda_.1} parent=1 // pred_check_branch
      %78 = sbr.rel (0) target = $region45
    $region44: #{_lambda_.1} parent=1 // pred_region
      %79 = dma.done [#allocation9], 1024
    $region45: #{_lambda_.1} parent=1 // pred_fallthru
      _
    %v81 = vld [vmem:[#allocation2] sm:$0xff]
    %v82 = vpack.c.bf16 %v81, %v81
    %v83 = vld [vmem:[#allocation5] sm:$0xf]
    %v84 = vld [vmem:[#allocation5 + $0x4] sm:$0xf]
    %v85 = vld [vmem:[%s2] sm:$0x1]
    %v87 = vlaneseq
    %v88 = vshrl.u32 %v87, 7
    %v89 = vsub.s32 0, %v88
    %v90 = vrot.slane %v85, %v89
    %v94 = vunpack.c.l.b16 %v83
    %v95 = vunpack.c.l.b16 %v84
    %v96 = vpack.c.b16 %v95, %v94
    %vm98 = vcmask 130048
    %v100 = vsel %vm98, %v82, 0
    %102 = vmatprep.subr.bf16.mxu0 0
    %103 = vmatpush1.bf16.msra.mxu0 0
    %104 = vmatprep.subr.bf16.mxu0 0
    %105 = vmatpush1.bf16.msra.mxu0 0
    %106 = vmatprep.subr.bf16.mxu0 0
    %107 = vmatpush1.bf16.msra.mxu0 0
    %108 = vmatprep.subr.bf16.mxu0 0
    %109 = vmatpush1.bf16.msra.mxu0 0
    %110 = vmatprep.subr.bf16.mxu0 0
    %111 = vmatpush1.bf16.msra.mxu0 0
    %112 = vmatprep.subr.bf16.mxu0 0
    %113 = vmatpush1.bf16.msra.mxu0 0
    %114 = vmatprep.subr.bf16.mxu0 0
    %115 = vmatpush1.bf16.msra.mxu0 0
    %116 = vmatprep.subr.bf16.mxu0 0
    %117 = vmatpush1.bf16.msra.mxu0 %v96
    %118 = vmatprep.subr.bf16.mxu0 0
    %119 = vmatpush2.bf16.msra.mxu0 0
    %120 = vmatprep.subr.bf16.mxu0 0
    %121 = vmatpush2.bf16.msra.mxu0 0
    %122 = vmatprep.subr.bf16.mxu0 0
    %123 = vmatpush2.bf16.msra.mxu0 0
    %124 = vmatprep.subr.bf16.mxu0 0
    %125 = vmatpush2.bf16.msra.mxu0 0
    %126 = vmatprep.subr.bf16.mxu0 0
    %127 = vmatpush2.bf16.msra.mxu0 0
    %128 = vmatprep.subr.bf16.mxu0 0
    %129 = vmatpush2.bf16.msra.mxu0 0
    %130 = vmatprep.subr.bf16.mxu0 0
    %131 = vmatpush2.bf16.msra.mxu0 0
    %132 = vmatprep.subr.bf16.mxu0 0
    %133 = vmatpush2.bf16.msra.mxu0 0
    %134 = vmatprep.mubr.bf16.mxu0 0
    %135 = vmatmul.mubr.bf16.gmra.mxu0 %v100
    %v136 = vpop.f32.mrf.mxu0
    %v137 = vadd.f32 %v90, %v136
    %v138 = vpop.f32.mrf.mxu0
    %v139 = vpop.f32.mrf.mxu0
    %v140 = vpop.f32.mrf.mxu0
    %141 = vdwg.mxu0
    %v142 = vmax.f32 %v137, 0.0
    %v143 = vpack.c.bf16 %v142, %v142
    %v144 = vld [vmem:[#allocation7] sm:$0xf]
    %v145 = vld [vmem:[#allocation7 + $0x4] sm:$0xf]
    %v146 = vld [vmem:[#allocation7 + $0x8] sm:$0xf]
    %v147 = vld [vmem:[#allocation7 + $0xc] sm:$0xf]
    %v148 = vld [vmem:[#allocation7 + $0x10] sm:$0xf]
    %v149 = vld [vmem:[#allocation7 + $0x14] sm:$0xf]
    %v150 = vld [vmem:[#allocation7 + $0x18] sm:$0xf]
    %v151 = vld [vmem:[#allocation7 + $0x1c] sm:$0xf]
    %v152 = vld [vmem:[#allocation7 + $0x20] sm:$0xf]
    %v153 = vld [vmem:[#allocation7 + $0x24] sm:$0xf]
    %v154 = vld [vmem:[#allocation7 + $0x28] sm:$0xf]
    %v155 = vld [vmem:[#allocation7 + $0x2c] sm:$0xf]
    %v156 = vld [vmem:[#allocation7 + $0x30] sm:$0xf]
    %v157 = vld [vmem:[#allocation7 + $0x34] sm:$0xf]
    %v158 = vld [vmem:[#allocation7 + $0x38] sm:$0xf]
    %v159 = vld [vmem:[#allocation7 + $0x3c] sm:$0xf]
    %v160 = vld [vmem:[%s4] sm:$0x1]
    %v162 = vlaneseq
    %v163 = vshrl.u32 %v162, 7
    %v164 = vsub.s32 0, %v163
    %v165 = vrot.slane %v160, %v164
    %v183 = vunpack.c.l.b16 %v144
    %v184 = vunpack.c.l.b16 %v145
    %v185 = vunpack.c.l.b16 %v146
    %v186 = vunpack.c.l.b16 %v147
    %v187 = vunpack.c.l.b16 %v148
    %v188 = vunpack.c.l.b16 %v149
    %v189 = vunpack.c.l.b16 %v150
    %v190 = vunpack.c.l.b16 %v151
    %v191 = vunpack.c.l.b16 %v152
    %v192 = vunpack.c.l.b16 %v153
    %v193 = vunpack.c.l.b16 %v154
    %v194 = vunpack.c.l.b16 %v155
    %v195 = vunpack.c.l.b16 %v156
    %v196 = vunpack.c.l.b16 %v157
    %v197 = vunpack.c.l.b16 %v158
    %v198 = vunpack.c.l.b16 %v159
    %v199 = vpack.c.b16 %v184, %v183
    %v200 = vpack.c.b16 %v186, %v185
    %v201 = vpack.c.b16 %v188, %v187
    %v202 = vpack.c.b16 %v190, %v189
    %v203 = vpack.c.b16 %v192, %v191
    %v204 = vpack.c.b16 %v194, %v193
    %v205 = vpack.c.b16 %v196, %v195
    %v206 = vpack.c.b16 %v198, %v197
    %215 = vmatprep.subr.bf16.mxu0 0
    %216 = vmatpush1.bf16.msra.mxu0 %v206
    %217 = vmatprep.subr.bf16.mxu0 0
    %218 = vmatpush1.bf16.msra.mxu0 %v205
    %219 = vmatprep.subr.bf16.mxu0 0
    %220 = vmatpush1.bf16.msra.mxu0 %v204
    %221 = vmatprep.subr.bf16.mxu0 0
    %222 = vmatpush1.bf16.msra.mxu0 %v203
    %223 = vmatprep.subr.bf16.mxu0 0
    %224 = vmatpush1.bf16.msra.mxu0 %v202
    %225 = vmatprep.subr.bf16.mxu0 0
    %226 = vmatpush1.bf16.msra.mxu0 %v201
    %227 = vmatprep.subr.bf16.mxu0 0
    %228 = vmatpush1.bf16.msra.mxu0 %v200
    %229 = vmatprep.subr.bf16.mxu0 0
    %230 = vmatpush1.bf16.msra.mxu0 %v199
    %231 = vmatprep.subr.bf16.mxu0 0
    %232 = vmatpush2.bf16.msra.mxu0 0
    %233 = vmatprep.subr.bf16.mxu0 0
    %234 = vmatpush2.bf16.msra.mxu0 0
    %235 = vmatprep.subr.bf16.mxu0 0
    %236 = vmatpush2.bf16.msra.mxu0 0
    %237 = vmatprep.subr.bf16.mxu0 0
    %238 = vmatpush2.bf16.msra.mxu0 0
    %239 = vmatprep.subr.bf16.mxu0 0
    %240 = vmatpush2.bf16.msra.mxu0 0
    %241 = vmatprep.subr.bf16.mxu0 0
    %242 = vmatpush2.bf16.msra.mxu0 0
    %243 = vmatprep.subr.bf16.mxu0 0
    %244 = vmatpush2.bf16.msra.mxu0 0
    %245 = vmatprep.subr.bf16.mxu0 0
    %246 = vmatpush2.bf16.msra.mxu0 0
    %247 = vmatprep.mubr.bf16.mxu0 0
    %248 = vmatmul.mubr.bf16.gmra.mxu0 %v143
    %v249 = vpop.f32.mrf.mxu0
    %v250 = vadd.f32 %v165, %v249
    %v251 = vpop.f32.mrf.mxu0
    %v252 = vpop.f32.mrf.mxu0
    %v253 = vpop.f32.mrf.mxu0
    %254 = vdwg.mxu0
    %v255 = vmax.f32 %v250, 0.0
    %v256 = vpack.c.bf16 %v255, %v255
    %v257 = vld [vmem:[#allocation8] sm:$0xf]
    %v258 = vld [vmem:[#allocation8 + $0x4] sm:$0xf]
    %v259 = vld [vmem:[#allocation8 + $0x8] sm:$0xf]
    %v260 = vld [vmem:[#allocation8 + $0xc] sm:$0xf]
    %v261 = vld [vmem:[#allocation8 + $0x10] sm:$0xf]
    %v262 = vld [vmem:[#allocation8 + $0x14] sm:$0xf]
    %v263 = vld [vmem:[#allocation8 + $0x18] sm:$0xf]
    %v264 = vld [vmem:[#allocation8 + $0x1c] sm:$0xf]
    %v265 = vld [vmem:[#allocation8 + $0x20] sm:$0xf]
    %v266 = vld [vmem:[#allocation8 + $0x24] sm:$0xf]
    %v267 = vld [vmem:[#allocation8 + $0x28] sm:$0xf]
    %v268 = vld [vmem:[#allocation8 + $0x2c] sm:$0xf]
    %v269 = vld [vmem:[#allocation8 + $0x30] sm:$0xf]
    %v270 = vld [vmem:[#allocation8 + $0x34] sm:$0xf]
    %v271 = vld [vmem:[#allocation8 + $0x38] sm:$0xf]
    %v272 = vld [vmem:[#allocation8 + $0x3c] sm:$0xf]
    %v273 = vld [vmem:[%s6] sm:$0x1]
    %v275 = vlaneseq
    %v276 = vshrl.u32 %v275, 7
    %v277 = vsub.s32 0, %v276
    %v278 = vrot.slane %v273, %v277
    %v296 = vunpack.c.l.b16 %v257
    %v297 = vunpack.c.l.b16 %v258
    %v298 = vunpack.c.l.b16 %v259
    %v299 = vunpack.c.l.b16 %v260
    %v300 = vunpack.c.l.b16 %v261
    %v301 = vunpack.c.l.b16 %v262
    %v302 = vunpack.c.l.b16 %v263
    %v303 = vunpack.c.l.b16 %v264
    %v304 = vunpack.c.l.b16 %v265
    %v305 = vunpack.c.l.b16 %v266
    %v306 = vunpack.c.l.b16 %v267
    %v307 = vunpack.c.l.b16 %v268
    %v308 = vunpack.c.l.b16 %v269
    %v309 = vunpack.c.l.b16 %v270
    %v310 = vunpack.c.l.b16 %v271
    %v311 = vunpack.c.l.b16 %v272
    %v312 = vpack.c.b16 %v297, %v296
    %v313 = vpack.c.b16 %v299, %v298
    %v314 = vpack.c.b16 %v301, %v300
    %v315 = vpack.c.b16 %v303, %v302
    %v316 = vpack.c.b16 %v305, %v304
    %v317 = vpack.c.b16 %v307, %v306
    %v318 = vpack.c.b16 %v309, %v308
    %v319 = vpack.c.b16 %v311, %v310
    %328 = vmatprep.subr.bf16.mxu0 0
    %329 = vmatpush1.bf16.msra.mxu0 %v319
    %330 = vmatprep.subr.bf16.mxu0 0
    %331 = vmatpush1.bf16.msra.mxu0 %v318
    %332 = vmatprep.subr.bf16.mxu0 0
    %333 = vmatpush1.bf16.msra.mxu0 %v317
    %334 = vmatprep.subr.bf16.mxu0 0
    %335 = vmatpush1.bf16.msra.mxu0 %v316
    %336 = vmatprep.subr.bf16.mxu0 0
    %337 = vmatpush1.bf16.msra.mxu0 %v315
    %338 = vmatprep.subr.bf16.mxu0 0
    %339 = vmatpush1.bf16.msra.mxu0 %v314
    %340 = vmatprep.subr.bf16.mxu0 0
    %341 = vmatpush1.bf16.msra.mxu0 %v313
    %342 = vmatprep.subr.bf16.mxu0 0
    %343 = vmatpush1.bf16.msra.mxu0 %v312
    %344 = vmatprep.subr.bf16.mxu0 0
    %345 = vmatpush2.bf16.msra.mxu0 0
    %346 = vmatprep.subr.bf16.mxu0 0
    %347 = vmatpush2.bf16.msra.mxu0 0
    %348 = vmatprep.subr.bf16.mxu0 0
    %349 = vmatpush2.bf16.msra.mxu0 0
    %350 = vmatprep.subr.bf16.mxu0 0
    %351 = vmatpush2.bf16.msra.mxu0 0
    %352 = vmatprep.subr.bf16.mxu0 0
    %353 = vmatpush2.bf16.msra.mxu0 0
    %354 = vmatprep.subr.bf16.mxu0 0
    %355 = vmatpush2.bf16.msra.mxu0 0
    %356 = vmatprep.subr.bf16.mxu0 0
    %357 = vmatpush2.bf16.msra.mxu0 0
    %358 = vmatprep.subr.bf16.mxu0 0
    %359 = vmatpush2.bf16.msra.mxu0 0
    %360 = vmatprep.mubr.bf16.mxu0 0
    %361 = vmatmul.mubr.bf16.gmra.mxu0 %v256
    %v362 = vpop.f32.mrf.mxu0
    %v363 = vadd.f32 %v278, %v362
    %v364 = vpop.f32.mrf.mxu0
    %v365 = vpop.f32.mrf.mxu0
    %v366 = vpop.f32.mrf.mxu0
    %367 = vdwg.mxu0
    %368 = vst [vmem:[#allocation10] sm:$0xff] %v363
    // Predicated region
    $region46: #{_lambda_.1} parent=1 // pred_check
      _
    $region47: #{_lambda_.1} parent=1 // pred_check_branch
      %370 = sbr.rel (0) target = $region49
    $region48: #{_lambda_.1} parent=1 // pred_region
      %s372 = ssub.s32 128, 128
      %373 = vsyncadd [#allocation4], %s372
      %s375 = sshll.u32 [#allocation10], 4
      %s376 = int_to_ptr.vmem [resolvable:$true] %s375
      %378 = dma.vmem_to_hbm [thread:$0]  %s376, 128, %s7, [#allocation4]
    $region49: #{_lambda_.1} parent=1 // pred_fallthru
      _
    // Predicated region
    $region50: #{_lambda_.1} parent=1 // pred_check
      _
    $region51: #{_lambda_.1} parent=1 // pred_check_branch
      %380 = sbr.rel (0) target = $region53
    $region52: #{_lambda_.1} parent=1 // pred_region
      %381 = dma.done [#allocation4], 128
    $region53: #{_lambda_.1} parent=1 // pred_fallthru
      _
    %382 = vsyncpa [#allocation3], 1
    %383 = vsyncpa [#allocation6], 1
    %384 = vsyncpa [#allocation9], 1
    %385 = vsyncpa [#allocation4], 1

// kernel: _lambda_.1
$region0: #{_lambda_.1}
  #allocation0 [shape = 'u32[]', space=smem, size = 0x4, offset = 0x4, fixed_abs, tag = 'smem constant byte address 0x4 - core index']
  #allocation1 [shape = 'u32[144,128]{1,0:T(1,128)}', space=vmem, size = 0x12000, scoped, tag = 'internal scratch']
  %s0 = inlined_call_operand.hbm [shape: f32[8,16], index: 0, kind: input, shape index: {}]
  %s1 = inlined_call_operand.hbm [shape: bf16[16,128], index: 1, kind: input, shape index: {}]
  %s2 = inlined_call_operand.vmem [shape: f32[1,128], index: 2, kind: input, shape index: {}]
  %s3 = inlined_call_operand.hbm [shape: bf16[128,128], index: 3, kind: input, shape index: {}]
  %s4 = inlined_call_operand.vmem [shape: f32[1,128], index: 4, kind: input, shape index: {}]
  %s5 = inlined_call_operand.hbm [shape: bf16[128,128], index: 5, kind: input, shape index: {}]
  %s6 = inlined_call_operand.vmem [shape: f32[1,128], index: 6, kind: input, shape index: {}]
  %s7 = inlined_call_operand.hbm [shape: f32[8,128], index: 7, kind: output, shape index: {}]
  %s8 = sld [smem:[#allocation0]]
  $region54: #{_lambda_.1} parent=0
    _
  %s10 = ssub.s32 1, %s8
  %s11 = scalar_select 0, %s10, %s8
  $region1: #{_lambda_.1} parent=0
    #allocation2 [shape = 'u8[4096]{0}', space=vmem, size = 0x1000, scoped, tag = 'input window, operand 0, single buffered']
    #allocation3 [shape = 's32[1]{0}', space=sflag, size = 0x4, scoped, tag = 'scoped memory for _lambda_.1']
    #allocation4 [shape = 's32[1]{0}', space=sflag, size = 0x4, scoped, tag = 'scoped memory for _lambda_.1']
    #allocation5 [shape = 'u8[4096]{0}', space=vmem, size = 0x1000, scoped, tag = 'input window, operand 1, single buffered']
    #allocation6 [shape = 's32[1]{0}', space=sflag, size = 0x4, scoped, tag = 'scoped memory for _lambda_.1']
    #allocation7 [shape = 'u8[32768]{0}', space=vmem, size = 0x8000, scoped, tag = 'input window, operand 3, single buffered']
    #allocation8 [shape = 'u8[32768]{0}', space=vmem, size = 0x8000, scoped, tag = 'input window, operand 5, single buffered']
    #allocation9 [shape = 's32[1]{0}', space=sflag, size = 0x4, scoped, tag = 'scoped memory for _lambda_.1']
    #allocation10 [shape = 'u8[4096]{0}', space=vmem, size = 0x1000, scoped, tag = 'output window, operand 0, single buffered']
    %12 = vsyncpa [#allocation3], 0
    %13 = vsyncpa [#allocation6], 0
    %14 = vsyncpa [#allocation9], 0
    %15 = vsyncpa [#allocation4], 0
    // Predicated region
    $region2: #{_lambda_.1} parent=1 // pred_check
      _
    $region3: #{_lambda_.1} parent=1 // pred_check_branch
      %17 = sbr.rel (0) target = $region5
    $region4: #{_lambda_.1} parent=1 // pred_region
      %s19 = ssub.s32 128, 128
      %20 = vsyncadd [#allocation3], %s19
      %s22 = sshll.u32 [#allocation2], 4
      %s23 = int_to_ptr.vmem [resolvable:$true] %s22
      %25 = dma.hbm_to_vmem [thread:$0]  %s0, 128, %s23, [#allocation3]
    $region5: #{_lambda_.1} parent=1 // pred_fallthru
      _
    // Predicated region
    $region6: #{_lambda_.1} parent=1 // pred_check
      _
    $region7: #{_lambda_.1} parent=1 // pred_check_branch
      %27 = sbr.rel (0) target = $region9
    $region8: #{_lambda_.1} parent=1 // pred_region
      %s29 = ssub.s32 128, 128
      %30 = vsyncadd [#allocation6], %s29
      %s31 = sshll.u32 [#allocation5], 4
      %s32 = int_to_ptr.vmem [resolvable:$true] %s31
      %37 = dma.hbm_to_vmem [thread:$0]  %s1, 128, %s32, [#allocation6], 64, 64, 4
    $region9: #{_lambda_.1} parent=1 // pred_fallthru
      _
    // Predicated region
    $region10: #{_lambda_.1} parent=1 // pred_check
      _
    $region11: #{_lambda_.1} parent=1 // pred_check_branch
      %39 = sbr.rel (0) target = $region13
    $region12: #{_lambda_.1} parent=1 // pred_region
      _
    $region13: #{_lambda_.1} parent=1 // pred_fallthru
      _
    // Predicated region
    $region14: #{_lambda_.1} parent=1 // pred_check
      _
    $region15: #{_lambda_.1} parent=1 // pred_check_branch
      %41 = sbr.rel (0) target = $region17
    $region16: #{_lambda_.1} parent=1 // pred_region
      %s43 = ssub.s32 1024, 1024
      %44 = vsyncadd [#allocation6], %s43
      %s45 = sshll.u32 [#allocation7], 4
      %s46 = int_to_ptr.vmem [resolvable:$true] %s45
      %51 = dma.hbm_to_vmem [thread:$0]  %s3, 1024, %s46, [#allocation6], 64, 64, 4
    $region17: #{_lambda_.1} parent=1 // pred_fallthru
      _
    // Predicated region
    $region18: #{_lambda_.1} parent=1 // pred_check
      _
    $region19: #{_lambda_.1} parent=1 // pred_check_branch
      %53 = sbr.rel (0) target = $region21
    $region20: #{_lambda_.1} parent=1 // pred_region
      _
    $region21: #{_lambda_.1} parent=1 // pred_fallthru
      _
    // Predicated region
    $region22: #{_lambda_.1} parent=1 // pred_check
      _
    $region23: #{_lambda_.1} parent=1 // pred_check_branch
      %55 = sbr.rel (0) target = $region25
    $region24: #{_lambda_.1} parent=1 // pred_region
      %s57 = ssub.s32 1024, 1024
      %58 = vsyncadd [#allocation9], %s57
      %s59 = sshll.u32 [#allocation8], 4
      %s60 = int_to_ptr.vmem [resolvable:$true] %s59
      %65 = dma.hbm_to_vmem [thread:$0]  %s5, 1024, %s60, [#allocation9], 64, 64, 4
    $region25: #{_lambda_.1} parent=1 // pred_fallthru
      _
    // Predicated region
    $region26: #{_lambda_.1} parent=1 // pred_check
      _
    $region27: #{_lambda_.1} parent=1 // pred_check_branch
      %67 = sbr.rel (0) target = $region29
    $region28: #{_lambda_.1} parent=1 // pred_region
      _
    $region29: #{_lambda_.1} parent=1 // pred_fallthru
      _
    // Predicated region
    $region30: #{_lambda_.1} parent=1 // pred_check
      _
    $region31: #{_lambda_.1} parent=1 // pred_check_branch
      %69 = sbr.rel (0) target = $region33
    $region32: #{_lambda_.1} parent=1 // pred_region
      %70 = dma.done [#allocation3], 128
    $region33: #{_lambda_.1} parent=1 // pred_fallthru
      _
    // Predicated region
    $region34: #{_lambda_.1} parent=1 // pred_check
      _
    $region35: #{_lambda_.1} parent=1 // pred_check_branch
      %72 = sbr.rel (0) target = $region37
    $region36: #{_lambda_.1} parent=1 // pred_region
      %73 = dma.done [#allocation6], 128
    $region37: #{_lambda_.1} parent=1 // pred_fallthru
      _
    // Predicated region
    $region38: #{_lambda_.1} parent=1 // pred_check
      _
    $region39: #{_lambda_.1} parent=1 // pred_check_branch
      %75 = sbr.rel (0) target = $region41
    $region40: #{_lambda_.1} parent=1 // pred_region
      %76 = dma.done [#allocation6], 1024
    $region41: #{_lambda_.1} parent=1 // pred_fallthru
      _
    // Predicated region
    $region42: #{_lambda_.1} parent=1 // pred_check
      _
    $region43: #{_lambda_.1} parent=1 // pred_check_branch
      %78 = sbr.rel (0) target = $region45
    $region44: #{_lambda_.1} parent=1 // pred_region
      %79 = dma.done [#allocation9], 1024
    $region45: #{_lambda_.1} parent=1 // pred_fallthru
      _
    %v81 = vld [vmem:[#allocation2] sm:$0xff]
    %v82 = vpack.c.bf16 %v81, %v81
    %v83 = vld [vmem:[#allocation5] sm:$0xf]
    %v84 = vld [vmem:[#allocation5 + $0x4] sm:$0xf]
    %v85 = vld [vmem:[%s2] sm:$0x1]
    %v87 = vlaneseq
    %v88 = vshrl.u32 %v87, 7
    %v89 = vsub.s32 0, %v88
    %v90 = vrot.slane %v85, %v89
    %v94 = vunpack.c.l.b16 %v83
    %v95 = vunpack.c.l.b16 %v84
    %v96 = vpack.c.b16 %v95, %v94
    %vm98 = vcmask 130048
    %v100 = vsel %vm98, %v82, 0
    %102 = vmatprep.subr.bf16.mxu0 0
    %103 = vmatpush1.bf16.msra.mxu0 0
    %104 = vmatprep.subr.bf16.mxu0 0
    %105 = vmatpush1.bf16.msra.mxu0 0
    %106 = vmatprep.subr.bf16.mxu0 0
    %107 = vmatpush1.bf16.msra.mxu0 0
    %108 = vmatprep.subr.bf16.mxu0 0
    %109 = vmatpush1.bf16.msra.mxu0 0
    %110 = vmatprep.subr.bf16.mxu0 0
    %111 = vmatpush1.bf16.msra.mxu0 0
    %112 = vmatprep.subr.bf16.mxu0 0
    %113 = vmatpush1.bf16.msra.mxu0 0
    %114 = vmatprep.subr.bf16.mxu0 0
    %115 = vmatpush1.bf16.msra.mxu0 0
    %116 = vmatprep.subr.bf16.mxu0 0
    %117 = vmatpush1.bf16.msra.mxu0 %v96
    %118 = vmatprep.subr.bf16.mxu0 0
    %119 = vmatpush2.bf16.msra.mxu0 0
    %120 = vmatprep.subr.bf16.mxu0 0
    %121 = vmatpush2.bf16.msra.mxu0 0
    %122 = vmatprep.subr.bf16.mxu0 0
    %123 = vmatpush2.bf16.msra.mxu0 0
    %124 = vmatprep.subr.bf16.mxu0 0
    %125 = vmatpush2.bf16.msra.mxu0 0
    %126 = vmatprep.subr.bf16.mxu0 0
    %127 = vmatpush2.bf16.msra.mxu0 0
    %128 = vmatprep.subr.bf16.mxu0 0
    %129 = vmatpush2.bf16.msra.mxu0 0
    %130 = vmatprep.subr.bf16.mxu0 0
    %131 = vmatpush2.bf16.msra.mxu0 0
    %132 = vmatprep.subr.bf16.mxu0 0
    %133 = vmatpush2.bf16.msra.mxu0 0
    %134 = vmatprep.mubr.bf16.mxu0 0
    %135 = vmatmul.mubr.bf16.gmra.mxu0 %v100
    %v136 = vpop.f32.mrf.mxu0
    %v137 = vadd.f32 %v90, %v136
    %v138 = vpop.f32.mrf.mxu0
    %v139 = vpop.f32.mrf.mxu0
    %v140 = vpop.f32.mrf.mxu0
    %141 = vdwg.mxu0
    %v142 = vmax.f32 %v137, 0.0
    %v143 = vpack.c.bf16 %v142, %v142
    %v144 = vld [vmem:[#allocation7] sm:$0xf]
    %v145 = vld [vmem:[#allocation7 + $0x4] sm:$0xf]
    %v146 = vld [vmem:[#allocation7 + $0x8] sm:$0xf]
    %v147 = vld [vmem:[#allocation7 + $0xc] sm:$0xf]
    %v148 = vld [vmem:[#allocation7 + $0x10] sm:$0xf]
    %v149 = vld [vmem:[#allocation7 + $0x14] sm:$0xf]
    %v150 = vld [vmem:[#allocation7 + $0x18] sm:$0xf]
    %v151 = vld [vmem:[#allocation7 + $0x1c] sm:$0xf]
    %v152 = vld [vmem:[#allocation7 + $0x20] sm:$0xf]
    %v153 = vld [vmem:[#allocation7 + $0x24] sm:$0xf]
    %v154 = vld [vmem:[#allocation7 + $0x28] sm:$0xf]
    %v155 = vld [vmem:[#allocation7 + $0x2c] sm:$0xf]
    %v156 = vld [vmem:[#allocation7 + $0x30] sm:$0xf]
    %v157 = vld [vmem:[#allocation7 + $0x34] sm:$0xf]
    %v158 = vld [vmem:[#allocation7 + $0x38] sm:$0xf]
    %v159 = vld [vmem:[#allocation7 + $0x3c] sm:$0xf]
    %v160 = vld [vmem:[%s4] sm:$0x1]
    %v162 = vlaneseq
    %v163 = vshrl.u32 %v162, 7
    %v164 = vsub.s32 0, %v163
    %v165 = vrot.slane %v160, %v164
    %v183 = vunpack.c.l.b16 %v144
    %v184 = vunpack.c.l.b16 %v145
    %v185 = vunpack.c.l.b16 %v146
    %v186 = vunpack.c.l.b16 %v147
    %v187 = vunpack.c.l.b16 %v148
    %v188 = vunpack.c.l.b16 %v149
    %v189 = vunpack.c.l.b16 %v150
    %v190 = vunpack.c.l.b16 %v151
    %v191 = vunpack.c.l.b16 %v152
    %v192 = vunpack.c.l.b16 %v153
    %v193 = vunpack.c.l.b16 %v154
    %v194 = vunpack.c.l.b16 %v155
    %v195 = vunpack.c.l.b16 %v156
    %v196 = vunpack.c.l.b16 %v157
    %v197 = vunpack.c.l.b16 %v158
    %v198 = vunpack.c.l.b16 %v159
    %v199 = vpack.c.b16 %v184, %v183
    %v200 = vpack.c.b16 %v186, %v185
    %v201 = vpack.c.b16 %v188, %v187
    %v202 = vpack.c.b16 %v190, %v189
    %v203 = vpack.c.b16 %v192, %v191
    %v204 = vpack.c.b16 %v194, %v193
    %v205 = vpack.c.b16 %v196, %v195
    %v206 = vpack.c.b16 %v198, %v197
    %215 = vmatprep.subr.bf16.mxu0 0
    %216 = vmatpush1.bf16.msra.mxu0 %v206
    %217 = vmatprep.subr.bf16.mxu0 0
    %218 = vmatpush1.bf16.msra.mxu0 %v205
    %219 = vmatprep.subr.bf16.mxu0 0
    %220 = vmatpush1.bf16.msra.mxu0 %v204
    %221 = vmatprep.subr.bf16.mxu0 0
    %222 = vmatpush1.bf16.msra.mxu0 %v203
    %223 = vmatprep.subr.bf16.mxu0 0
    %224 = vmatpush1.bf16.msra.mxu0 %v202
    %225 = vmatprep.subr.bf16.mxu0 0
    %226 = vmatpush1.bf16.msra.mxu0 %v201
    %227 = vmatprep.subr.bf16.mxu0 0
    %228 = vmatpush1.bf16.msra.mxu0 %v200
    %229 = vmatprep.subr.bf16.mxu0 0
    %230 = vmatpush1.bf16.msra.mxu0 %v199
    %231 = vmatprep.subr.bf16.mxu0 0
    %232 = vmatpush2.bf16.msra.mxu0 0
    %233 = vmatprep.subr.bf16.mxu0 0
    %234 = vmatpush2.bf16.msra.mxu0 0
    %235 = vmatprep.subr.bf16.mxu0 0
    %236 = vmatpush2.bf16.msra.mxu0 0
    %237 = vmatprep.subr.bf16.mxu0 0
    %238 = vmatpush2.bf16.msra.mxu0 0
    %239 = vmatprep.subr.bf16.mxu0 0
    %240 = vmatpush2.bf16.msra.mxu0 0
    %241 = vmatprep.subr.bf16.mxu0 0
    %242 = vmatpush2.bf16.msra.mxu0 0
    %243 = vmatprep.subr.bf16.mxu0 0
    %244 = vmatpush2.bf16.msra.mxu0 0
    %245 = vmatprep.subr.bf16.mxu0 0
    %246 = vmatpush2.bf16.msra.mxu0 0
    %247 = vmatprep.mubr.bf16.mxu0 0
    %248 = vmatmul.mubr.bf16.gmra.mxu0 %v143
    %v249 = vpop.f32.mrf.mxu0
    %v250 = vadd.f32 %v165, %v249
    %v251 = vpop.f32.mrf.mxu0
    %v252 = vpop.f32.mrf.mxu0
    %v253 = vpop.f32.mrf.mxu0
    %254 = vdwg.mxu0
    %v255 = vmax.f32 %v250, 0.0
    %v256 = vpack.c.bf16 %v255, %v255
    %v257 = vld [vmem:[#allocation8] sm:$0xf]
    %v258 = vld [vmem:[#allocation8 + $0x4] sm:$0xf]
    %v259 = vld [vmem:[#allocation8 + $0x8] sm:$0xf]
    %v260 = vld [vmem:[#allocation8 + $0xc] sm:$0xf]
    %v261 = vld [vmem:[#allocation8 + $0x10] sm:$0xf]
    %v262 = vld [vmem:[#allocation8 + $0x14] sm:$0xf]
    %v263 = vld [vmem:[#allocation8 + $0x18] sm:$0xf]
    %v264 = vld [vmem:[#allocation8 + $0x1c] sm:$0xf]
    %v265 = vld [vmem:[#allocation8 + $0x20] sm:$0xf]
    %v266 = vld [vmem:[#allocation8 + $0x24] sm:$0xf]
    %v267 = vld [vmem:[#allocation8 + $0x28] sm:$0xf]
    %v268 = vld [vmem:[#allocation8 + $0x2c] sm:$0xf]
    %v269 = vld [vmem:[#allocation8 + $0x30] sm:$0xf]
    %v270 = vld [vmem:[#allocation8 + $0x34] sm:$0xf]
    %v271 = vld [vmem:[#allocation8 + $0x38] sm:$0xf]
    %v272 = vld [vmem:[#allocation8 + $0x3c] sm:$0xf]
    %v273 = vld [vmem:[%s6] sm:$0x1]
    %v275 = vlaneseq
    %v276 = vshrl.u32 %v275, 7
    %v277 = vsub.s32 0, %v276
    %v278 = vrot.slane %v273, %v277
    %v296 = vunpack.c.l.b16 %v257
    %v297 = vunpack.c.l.b16 %v258
    %v298 = vunpack.c.l.b16 %v259
    %v299 = vunpack.c.l.b16 %v260
    %v300 = vunpack.c.l.b16 %v261
    %v301 = vunpack.c.l.b16 %v262
    %v302 = vunpack.c.l.b16 %v263
    %v303 = vunpack.c.l.b16 %v264
    %v304 = vunpack.c.l.b16 %v265
    %v305 = vunpack.c.l.b16 %v266
    %v306 = vunpack.c.l.b16 %v267
    %v307 = vunpack.c.l.b16 %v268
    %v308 = vunpack.c.l.b16 %v269
    %v309 = vunpack.c.l.b16 %v270
    %v310 = vunpack.c.l.b16 %v271
    %v311 = vunpack.c.l.b16 %v272
    %v312 = vpack.c.b16 %v297, %v296
    %v313 = vpack.c.b16 %v299, %v298
    %v314 = vpack.c.b16 %v301, %v300
    %v315 = vpack.c.b16 %v303, %v302
    %v316 = vpack.c.b16 %v305, %v304
    %v317 = vpack.c.b16 %v307, %v306
    %v318 = vpack.c.b16 %v309, %v308
    %v319 = vpack.c.b16 %v311, %v310
    %328 = vmatprep.subr.bf16.mxu0 0
    %329 = vmatpush1.bf16.msra.mxu0 %v319
    %330 = vmatprep.subr.bf16.mxu0 0
    %331 = vmatpush1.bf16.msra.mxu0 %v318
    %332 = vmatprep.subr.bf16.mxu0 0
    %333 = vmatpush1.bf16.msra.mxu0 %v317
    %334 = vmatprep.subr.bf16.mxu0 0
    %335 = vmatpush1.bf16.msra.mxu0 %v316
    %336 = vmatprep.subr.bf16.mxu0 0
    %337 = vmatpush1.bf16.msra.mxu0 %v315
    %338 = vmatprep.subr.bf16.mxu0 0
    %339 = vmatpush1.bf16.msra.mxu0 %v314
    %340 = vmatprep.subr.bf16.mxu0 0
    %341 = vmatpush1.bf16.msra.mxu0 %v313
    %342 = vmatprep.subr.bf16.mxu0 0
    %343 = vmatpush1.bf16.msra.mxu0 %v312
    %344 = vmatprep.subr.bf16.mxu0 0
    %345 = vmatpush2.bf16.msra.mxu0 0
    %346 = vmatprep.subr.bf16.mxu0 0
    %347 = vmatpush2.bf16.msra.mxu0 0
    %348 = vmatprep.subr.bf16.mxu0 0
    %349 = vmatpush2.bf16.msra.mxu0 0
    %350 = vmatprep.subr.bf16.mxu0 0
    %351 = vmatpush2.bf16.msra.mxu0 0
    %352 = vmatprep.subr.bf16.mxu0 0
    %353 = vmatpush2.bf16.msra.mxu0 0
    %354 = vmatprep.subr.bf16.mxu0 0
    %355 = vmatpush2.bf16.msra.mxu0 0
    %356 = vmatprep.subr.bf16.mxu0 0
    %357 = vmatpush2.bf16.msra.mxu0 0
    %358 = vmatprep.subr.bf16.mxu0 0
    %359 = vmatpush2.bf16.msra.mxu0 0
    %360 = vmatprep.mubr.bf16.mxu0 0
    %361 = vmatmul.mubr.bf16.gmra.mxu0 %v256
    %v362 = vpop.f32.mrf.mxu0
    %v363 = vadd.f32 %v278, %v362
    %v364 = vpop.f32.mrf.mxu0
    %v365 = vpop.f32.mrf.mxu0
    %v366 = vpop.f32.mrf.mxu0
    %367 = vdwg.mxu0
    %368 = vst [vmem:[#allocation10] sm:$0xff] %v363
    // Predicated region
    $region46: #{_lambda_.1} parent=1 // pred_check
      _
    $region47: #{_lambda_.1} parent=1 // pred_check_branch
      %370 = sbr.rel (0) target = $region49
    $region48: #{_lambda_.1} parent=1 // pred_region
      %s372 = ssub.s32 128, 128
      %373 = vsyncadd [#allocation4], %s372
      %s375 = sshll.u32 [#allocation10], 4
      %s376 = int_to_ptr.vmem [resolvable:$true] %s375
      %378 = dma.vmem_to_hbm [thread:$0]  %s376, 128, %s7, [#allocation4]
    $region49: #{_lambda_.1} parent=1 // pred_fallthru
      _
    // Predicated region
    $region50: #{_lambda_.1} parent=1 // pred_check
      _
    $region51: #{_lambda_.1} parent=1 // pred_check_branch
      %380 = sbr.rel (0) target = $region53
    $region52: #{_lambda_.1} parent=1 // pred_region
      %381 = dma.done [#allocation4], 128
    $region53: #{_lambda_.1} parent=1 // pred_fallthru
      _
    %382 = vsyncpa [#allocation3], 1
    %383 = vsyncpa [#allocation6], 1
    %384 = vsyncpa [#allocation9], 1
    %385 = vsyncpa [#allocation4], 1

</llo_original>
